<compile_context>
chip_gen: v7x
topology: tpu7x:2x2x1
jax: 0.10.0
libtpu: 0.0.40
codegen_flags: <defaults>
</compile_context>

<pallas_src>
import functools

import jax
import jax.numpy as jnp
from jax.experimental import pallas as pl
from jax.experimental.pallas import tpu as pltpu


def _round_up(x, m):
    return (x + m - 1) // m * m


def _global_embedding_kernel(x_ref, w1_ref, b1_ref, w2_ref, b2_ref, out_ref,
                             acc_ref, *, h_chunk, n_chunks):
    """out = relu(x @ W1 + b1) @ W2 + b2, hidden dim processed in chunks."""
    # In-kernel cast of the activation tile to the compute dtype (cheap VPU work).
    x = x_ref[...].astype(w1_ref.dtype)
    # Fold the final bias into the accumulator init.
    acc_ref[...] = jnp.broadcast_to(b2_ref[...], acc_ref.shape)
    for c in range(n_chunks):                       # static unroll (<= 4 in production)
        lo = c * h_chunk
        h = jnp.dot(x, w1_ref[:, lo:lo + h_chunk],
                    preferred_element_type=jnp.float32)
        h = jnp.maximum(h + b1_ref[:, lo:lo + h_chunk], 0.0)   # Linear1+BN1 (folded), ReLU
        acc_ref[...] += jnp.dot(h.astype(w2_ref.dtype),
                                w2_ref[lo:lo + h_chunk, :],
                                preferred_element_type=jnp.float32)
    out_ref[...] = acc_ref[...].astype(out_ref.dtype)


def global_embedding_forward(x, params, *, eps=1e-5, block_b=512, h_chunk=512,
                             compute_dtype=jnp.bfloat16, out_dtype=jnp.float32):
    """GlobalEmbedding.forward (eval mode) as one fused Pallas kernel.

    params use PyTorch layout:
      w1 (hidden, in), b1 (hidden,), bn1_gamma/bn1_beta/bn1_mean/bn1_var (hidden,)
      w2 (out, hidden), b2 (out,),   bn2_mean/bn2_var (out,)        [affine=False]
    """
    B0, d_in = x.shape
    d_hidden = params["w1"].shape[0]
    d_out = params["w2"].shape[0]

    # ---- fold BatchNorm (running stats) into the linears (one-time vector math)
    s1 = params["bn1_gamma"] * jax.lax.rsqrt(params["bn1_var"] + eps)        # (H,)
    w1f = (params["w1"].T * s1[None, :]).astype(compute_dtype)               # (Din, H)
    b1f = ((params["b1"] - params["bn1_mean"]) * s1 + params["bn1_beta"])
    b1f = b1f.astype(jnp.float32).reshape(1, d_hidden)

    s2 = jax.lax.rsqrt(params["bn2_var"] + eps)                              # (Dout,)
    w2f = (params["w2"].T * s2[None, :]).astype(compute_dtype)               # (H, Dout)
    b2f = (params["b2"] - params["bn2_mean"]) * s2
    b2f = b2f.astype(jnp.float32).reshape(1, d_out)

    # ---- hidden-dim chunking (caps live intermediate at block_b x h_chunk)
    if d_hidden % h_chunk != 0:
        h_chunk = d_hidden
    n_chunks = d_hidden // h_chunk

    # ---- batch tiling: no full-array pad; last tile is partial (masked writeback).
    x_in = x
    B = B0
    if B < 8:                                    # tiny batches: pad up to one (8, *) tile
        x_in = jnp.pad(x_in, ((0, 8 - B), (0, 0)))
        B = 8
    # >=2 batch tiles whenever possible so v7x's two TensorCores both get work.
    block_b = max(8, min(block_b, _round_up(pl.cdiv(B, 2), 8)))
    grid_b = pl.cdiv(B, block_b)

    kernel = functools.partial(_global_embedding_kernel,
                               h_chunk=h_chunk, n_chunks=n_chunks)

    # Rough VMEM footprint -> tight scoped limit (v7x has only 64 MiB physical VMEM).
    cdt = jnp.dtype(compute_dtype).itemsize
    est = ((d_in * d_hidden + d_hidden * d_out) * cdt * 2       # weights (<= 2 buffers)
           + (d_hidden + d_out) * 4 * 2                         # folded biases
           + block_b * d_in * x.dtype.itemsize * 2              # x tiles (double-buffered)
           + block_b * d_out * jnp.dtype(out_dtype).itemsize * 2  # output tiles
           + block_b * (d_out + 2 * h_chunk) * 4)               # acc scratch + h intermediate
    vmem_limit = int(min(48 * 2**20, max(32 * 2**20, 1.5 * est)))

    def build(single_buffer_weights):
        def fixed(shape):
            # constant index_map -> tile stays resident across the batch grid
            if single_buffer_weights:
                return pl.BlockSpec(shape, lambda i: (0, 0),
                                    pipeline_mode=pl.Buffered(1))
            return pl.BlockSpec(shape, lambda i: (0, 0))

        return pl.pallas_call(
            kernel,
            out_shape=jax.ShapeDtypeStruct((B, d_out), out_dtype),
            grid_spec=pltpu.PrefetchScalarGridSpec(
                num_scalar_prefetch=0,
                grid=(grid_b,),
                in_specs=[
                    pl.BlockSpec((block_b, d_in), lambda i: (i, 0)),   # x batch tile
                    fixed((d_in, d_hidden)),                           # W1 (BN-folded)
                    fixed((1, d_hidden)),                              # b1 (BN-folded)
                    fixed((d_hidden, d_out)),                          # W2 (BN-folded)
                    fixed((1, d_out)),                                 # b2 (BN-folded)
                ],
                out_specs=pl.BlockSpec((block_b, d_out), lambda i: (i, 0)),
                scratch_shapes=[pltpu.VMEM((block_b, d_out), jnp.float32)],
            ),
            compiler_params=pltpu.CompilerParams(
                dimension_semantics=("parallel",),
                vmem_limit_bytes=vmem_limit,
            ),
        )

    try:
        out = build(True)(x_in, w1f, b1f, w2f, b2f)
    except Exception:
        # pl.Buffered(1) not supported by this jax version -> default double-buffering.
        out = build(False)(x_in, w1f, b1f, w2f, b2f)

    return out[:B0] if B0 != B else out


# ---------------------------- pure-JAX reference ----------------------------
def global_embedding_ref(x, params, eps=1e-5):
    h = x @ params["w1"].T + params["b1"]
    h = (h - params["bn1_mean"]) / jnp.sqrt(params["bn1_var"] + eps)
    h = h * params["bn1_gamma"] + params["bn1_beta"]
    h = jnp.maximum(h, 0.0)
    y = h @ params["w2"].T + params["b2"]
    y = (y - params["bn2_mean"]) / jnp.sqrt(params["bn2_var"] + eps)
    return y


if __name__ == "__main__":
    # Small shapes consistent with the module (real model: 768 / 2048 / 512).
    # B=13 is deliberately not a multiple of 8 to exercise the partial-tile path.
    B, d_in, d_hidden, d_out = 13, 32, 64, 16

    key = jax.random.PRNGKey(0)
    ks = jax.random.split(key, 11)
    params = {
        "w1": jax.random.normal(ks[0], (d_hidden, d_in), jnp.float32) * 0.05,
        "b1": jax.random.normal(ks[1], (d_hidden,), jnp.float32) * 0.01,
        "bn1_gamma": jax.random.uniform(ks[2], (d_hidden,), jnp.float32,
                                        minval=0.5, maxval=1.5),
        "bn1_beta": jax.random.normal(ks[3], (d_hidden,), jnp.float32) * 0.01,
        "bn1_mean": jax.random.normal(ks[4], (d_hidden,), jnp.float32) * 0.1,
        "bn1_var": jax.random.uniform(ks[5], (d_hidden,), jnp.float32,
                                      minval=0.5, maxval=1.5),
        "w2": jax.random.normal(ks[6], (d_out, d_hidden), jnp.float32) * 0.05,
        "b2": jax.random.normal(ks[7], (d_out,), jnp.float32) * 0.01,
        "bn2_mean": jax.random.normal(ks[8], (d_out,), jnp.float32) * 0.1,
        "bn2_var": jax.random.uniform(ks[9], (d_out,), jnp.float32,
                                      minval=0.5, maxval=1.5),
    }
    x = jax.random.normal(ks[10], (B, d_in), jnp.float32)

    ref = global_embedding_ref(x, params)

    # f32 compute path: tight numerical check against the unfused reference.
    y32 = jax.block_until_ready(
        global_embedding_forward(x, params, compute_dtype=jnp.float32,
                                 out_dtype=jnp.float32))
    assert y32.shape == (B, d_out)
    assert jnp.allclose(y32, ref, atol=1e-3, rtol=1e-3), "f32 mismatch vs reference"

    # bf16 production path (default compute_dtype, bf16 writeback): loose check.
    ybf = jax.block_until_ready(
        global_embedding_forward(x, params, out_dtype=jnp.bfloat16))
    assert ybf.shape == (B, d_out)
    assert jnp.allclose(ybf.astype(jnp.float32), ref, atol=5e-2, rtol=5e-2), \
        "bf16 mismatch vs reference"

    print("KERNEL_OK")
</pallas_src>

<mosaic_0001>
module attributes {stable_mosaic.version = 11 : i64} {
  func.func @_global_embedding_kernel(%arg0: i32, %arg1: memref<8x32xf32, #tpu.memory_space<vmem>>, %arg2: memref<32x64xf32, #tpu.memory_space<vmem>>, %arg3: memref<1x64xf32, #tpu.memory_space<vmem>>, %arg4: memref<64x16xf32, #tpu.memory_space<vmem>>, %arg5: memref<1x16xf32, #tpu.memory_space<vmem>>, %arg6: memref<8x16xf32, #tpu.memory_space<vmem>>, %arg7: memref<8x16xf32, #tpu.memory_space<vmem>>) attributes {dimension_semantics = [#tpu.dimension_semantics<parallel>], iteration_bounds = array<i64: 2>, scalar_prefetch = 0 : i64, scratch_operands = 1 : i64, tpu.core_type = #tpu.core_type<tc>, window_params = [{transform_indices = @transform_0, window_bounds = array<i64: 8, 32>}, {pipeline_mode = #tpu.pipeline_mode<synchronous>, transform_indices = @transform_1, window_bounds = array<i64: 32, 64>}, {pipeline_mode = #tpu.pipeline_mode<synchronous>, transform_indices = @transform_2, window_bounds = array<i64: 1, 64>}, {pipeline_mode = #tpu.pipeline_mode<synchronous>, transform_indices = @transform_3, window_bounds = array<i64: 64, 16>}, {pipeline_mode = #tpu.pipeline_mode<synchronous>, transform_indices = @transform_4, window_bounds = array<i64: 1, 16>}, {transform_indices = @transform_5, window_bounds = array<i64: 8, 16>}]} {
    %c0 = arith.constant 0 : index
    %c0_0 = arith.constant 0 : index
    %0 = vector.load %arg1[%c0, %c0_0] : memref<8x32xf32, #tpu.memory_space<vmem>>, vector<8x32xf32>
    %c0_1 = arith.constant 0 : index
    %c0_2 = arith.constant 0 : index
    %1 = vector.load %arg5[%c0_1, %c0_2] : memref<1x16xf32, #tpu.memory_space<vmem>>, vector<1x16xf32>
    %2 = vector.shape_cast %1 : vector<1x16xf32> to vector<1x16xf32>
    %3 = vector.broadcast %2 : vector<1x16xf32> to vector<8x16xf32>
    %c0_3 = arith.constant 0 : index
    %c0_4 = arith.constant 0 : index
    %4 = vector.load %arg7[%c0_3, %c0_4] : memref<8x16xf32, #tpu.memory_space<vmem>>, vector<8x16xf32>
    tpu.vector_store %arg7[%c0_3, %c0_4], %3 {strides = array<i32>} : memref<8x16xf32, #tpu.memory_space<vmem>>, vector<8x16xf32>,
    %c0_5 = arith.constant 0 : index
    %c0_6 = arith.constant 0 : index
    %5 = vector.load %arg2[%c0_5, %c0_6] : memref<32x64xf32, #tpu.memory_space<vmem>>, vector<32x64xf32>
    %cst = arith.constant dense<0.000000e+00> : vector<8x64xf32>
    %6 = tpu.matmul %0, %5, %cst {dimension_numbers = #tpu.dot_dimension_numbers<[1], [0], [0], [1], [0, 0, 1, 1], [], []>} : vector<8x32xf32>, vector<32x64xf32>, vector<8x64xf32> -> vector<8x64xf32>
    %c0_7 = arith.constant 0 : index
    %c0_8 = arith.constant 0 : index
    %7 = vector.load %arg3[%c0_7, %c0_8] : memref<1x64xf32, #tpu.memory_space<vmem>>, vector<1x64xf32>
    %8 = vector.broadcast %7 : vector<1x64xf32> to vector<8x64xf32>
    %9 = arith.addf %6, %8 : vector<8x64xf32>
    %cst_9 = arith.constant 0.000000e+00 : f32
    %10 = vector.broadcast %cst_9 : f32 to vector<8x64xf32>
    %11 = arith.maximumf %9, %10 : vector<8x64xf32>
    %c0_10 = arith.constant 0 : index
    %c0_11 = arith.constant 0 : index
    %12 = vector.load %arg7[%c0_10, %c0_11] : memref<8x16xf32, #tpu.memory_space<vmem>>, vector<8x16xf32>
    %c0_12 = arith.constant 0 : index
    %c0_13 = arith.constant 0 : index
    %13 = vector.load %arg4[%c0_12, %c0_13] : memref<64x16xf32, #tpu.memory_space<vmem>>, vector<64x16xf32>
    %cst_14 = arith.constant dense<0.000000e+00> : vector<8x16xf32>
    %14 = tpu.matmul %11, %13, %cst_14 {dimension_numbers = #tpu.dot_dimension_numbers<[1], [0], [0], [1], [0, 0, 1, 1], [], []>} : vector<8x64xf32>, vector<64x16xf32>, vector<8x16xf32> -> vector<8x16xf32>
    %15 = arith.addf %12, %14 : vector<8x16xf32>
    %c0_15 = arith.constant 0 : index
    %c0_16 = arith.constant 0 : index
    %16 = vector.load %arg7[%c0_15, %c0_16] : memref<8x16xf32, #tpu.memory_space<vmem>>, vector<8x16xf32>
    tpu.vector_store %arg7[%c0_15, %c0_16], %15 {strides = array<i32>} : memref<8x16xf32, #tpu.memory_space<vmem>>, vector<8x16xf32>,
    %c0_17 = arith.constant 0 : index
    %c0_18 = arith.constant 0 : index
    %17 = vector.load %arg7[%c0_17, %c0_18] : memref<8x16xf32, #tpu.memory_space<vmem>>, vector<8x16xf32>
    %c0_19 = arith.constant 0 : index
    %c0_20 = arith.constant 0 : index
    %18 = vector.load %arg6[%c0_19, %c0_20] : memref<8x16xf32, #tpu.memory_space<vmem>>, vector<8x16xf32>
    tpu.vector_store %arg6[%c0_19, %c0_20], %17 {strides = array<i32>} : memref<8x16xf32, #tpu.memory_space<vmem>>, vector<8x16xf32>,
    return
  }
  func.func @transform_0(%arg0: i32) -> (i32, i32) {
    %c0_i32 = arith.constant 0 : i32
    %c0_i32_0 = arith.constant 0 : i32
    return %arg0, %c0_i32 : i32, i32
  }
  func.func @transform_1(%arg0: i32) -> (i32, i32) {
    %c0_i32 = arith.constant 0 : i32
    %c0_i32_0 = arith.constant 0 : i32
    %c0_i32_1 = arith.constant 0 : i32
    return %c0_i32, %c0_i32_0 : i32, i32
  }
  func.func @transform_2(%arg0: i32) -> (i32, i32) {
    %c0_i32 = arith.constant 0 : i32
    %c0_i32_0 = arith.constant 0 : i32
    %c0_i32_1 = arith.constant 0 : i32
    return %c0_i32, %c0_i32_0 : i32, i32
  }
  func.func @transform_3(%arg0: i32) -> (i32, i32) {
    %c0_i32 = arith.constant 0 : i32
    %c0_i32_0 = arith.constant 0 : i32
    %c0_i32_1 = arith.constant 0 : i32
    return %c0_i32, %c0_i32_0 : i32, i32
  }
  func.func @transform_4(%arg0: i32) -> (i32, i32) {
    %c0_i32 = arith.constant 0 : i32
    %c0_i32_0 = arith.constant 0 : i32
    %c0_i32_1 = arith.constant 0 : i32
    return %c0_i32, %c0_i32_0 : i32, i32
  }
  func.func @transform_5(%arg0: i32) -> (i32, i32) {
    %c0_i32 = arith.constant 0 : i32
    %c0_i32_0 = arith.constant 0 : i32
    return %arg0, %c0_i32 : i32, i32
  }
}

module attributes {stable_mosaic.version = 11 : i64} {
  func.func @_global_embedding_kernel(%arg0: i32, %arg1: memref<8x32xf32, #tpu.memory_space<vmem>>, %arg2: memref<32x64xf32, #tpu.memory_space<vmem>>, %arg3: memref<1x64xf32, #tpu.memory_space<vmem>>, %arg4: memref<64x16xf32, #tpu.memory_space<vmem>>, %arg5: memref<1x16xf32, #tpu.memory_space<vmem>>, %arg6: memref<8x16xf32, #tpu.memory_space<vmem>>, %arg7: memref<8x16xf32, #tpu.memory_space<vmem>>) attributes {dimension_semantics = [#tpu.dimension_semantics<parallel>], iteration_bounds = array<i64: 2>, scalar_prefetch = 0 : i64, scratch_operands = 1 : i64, tpu.core_type = #tpu.core_type<tc>, window_params = [{transform_indices = @transform_0, window_bounds = array<i64: 8, 32>}, {pipeline_mode = #tpu.pipeline_mode<synchronous>, transform_indices = @transform_1, window_bounds = array<i64: 32, 64>}, {pipeline_mode = #tpu.pipeline_mode<synchronous>, transform_indices = @transform_2, window_bounds = array<i64: 1, 64>}, {pipeline_mode = #tpu.pipeline_mode<synchronous>, transform_indices = @transform_3, window_bounds = array<i64: 64, 16>}, {pipeline_mode = #tpu.pipeline_mode<synchronous>, transform_indices = @transform_4, window_bounds = array<i64: 1, 16>}, {transform_indices = @transform_5, window_bounds = array<i64: 8, 16>}]} {
    %c0 = arith.constant 0 : index
    %c0_0 = arith.constant 0 : index
    %0 = vector.load %arg1[%c0, %c0_0] : memref<8x32xf32, #tpu.memory_space<vmem>>, vector<8x32xf32>
    %c0_1 = arith.constant 0 : index
    %c0_2 = arith.constant 0 : index
    %1 = vector.load %arg5[%c0_1, %c0_2] : memref<1x16xf32, #tpu.memory_space<vmem>>, vector<1x16xf32>
    %2 = vector.shape_cast %1 : vector<1x16xf32> to vector<1x16xf32>
    %3 = vector.broadcast %2 : vector<1x16xf32> to vector<8x16xf32>
    %c0_3 = arith.constant 0 : index
    %c0_4 = arith.constant 0 : index
    %4 = vector.load %arg7[%c0_3, %c0_4] : memref<8x16xf32, #tpu.memory_space<vmem>>, vector<8x16xf32>
    tpu.vector_store %arg7[%c0_3, %c0_4], %3 {strides = array<i32>} : memref<8x16xf32, #tpu.memory_space<vmem>>, vector<8x16xf32>,
    %c0_5 = arith.constant 0 : index
    %c0_6 = arith.constant 0 : index
    %5 = vector.load %arg2[%c0_5, %c0_6] : memref<32x64xf32, #tpu.memory_space<vmem>>, vector<32x64xf32>
    %cst = arith.constant dense<0.000000e+00> : vector<8x64xf32>
    %6 = tpu.matmul %0, %5, %cst {dimension_numbers = #tpu.dot_dimension_numbers<[1], [0], [0], [1], [0, 0, 1, 1], [], []>} : vector<8x32xf32>, vector<32x64xf32>, vector<8x64xf32> -> vector<8x64xf32>
    %c0_7 = arith.constant 0 : index
    %c0_8 = arith.constant 0 : index
    %7 = vector.load %arg3[%c0_7, %c0_8] : memref<1x64xf32, #tpu.memory_space<vmem>>, vector<1x64xf32>
    %8 = vector.broadcast %7 : vector<1x64xf32> to vector<8x64xf32>
    %9 = arith.addf %6, %8 : vector<8x64xf32>
    %cst_9 = arith.constant 0.000000e+00 : f32
    %10 = vector.broadcast %cst_9 : f32 to vector<8x64xf32>
    %11 = arith.maximumf %9, %10 : vector<8x64xf32>
    %c0_10 = arith.constant 0 : index
    %c0_11 = arith.constant 0 : index
    %12 = vector.load %arg7[%c0_10, %c0_11] : memref<8x16xf32, #tpu.memory_space<vmem>>, vector<8x16xf32>
    %c0_12 = arith.constant 0 : index
    %c0_13 = arith.constant 0 : index
    %13 = vector.load %arg4[%c0_12, %c0_13] : memref<64x16xf32, #tpu.memory_space<vmem>>, vector<64x16xf32>
    %cst_14 = arith.constant dense<0.000000e+00> : vector<8x16xf32>
    %14 = tpu.matmul %11, %13, %cst_14 {dimension_numbers = #tpu.dot_dimension_numbers<[1], [0], [0], [1], [0, 0, 1, 1], [], []>} : vector<8x64xf32>, vector<64x16xf32>, vector<8x16xf32> -> vector<8x16xf32>
    %15 = arith.addf %12, %14 : vector<8x16xf32>
    %c0_15 = arith.constant 0 : index
    %c0_16 = arith.constant 0 : index
    %16 = vector.load %arg7[%c0_15, %c0_16] : memref<8x16xf32, #tpu.memory_space<vmem>>, vector<8x16xf32>
    tpu.vector_store %arg7[%c0_15, %c0_16], %15 {strides = array<i32>} : memref<8x16xf32, #tpu.memory_space<vmem>>, vector<8x16xf32>,
    %c0_17 = arith.constant 0 : index
    %c0_18 = arith.constant 0 : index
    %17 = vector.load %arg7[%c0_17, %c0_18] : memref<8x16xf32, #tpu.memory_space<vmem>>, vector<8x16xf32>
    %c0_19 = arith.constant 0 : index
    %c0_20 = arith.constant 0 : index
    %18 = vector.load %arg6[%c0_19, %c0_20] : memref<8x16xf32, #tpu.memory_space<vmem>>, vector<8x16xf32>
    tpu.vector_store %arg6[%c0_19, %c0_20], %17 {strides = array<i32>} : memref<8x16xf32, #tpu.memory_space<vmem>>, vector<8x16xf32>,
    return
  }
  func.func @transform_0(%arg0: i32) -> (i32, i32) {
    %c0_i32 = arith.constant 0 : i32
    %c0_i32_0 = arith.constant 0 : i32
    return %arg0, %c0_i32 : i32, i32
  }
  func.func @transform_1(%arg0: i32) -> (i32, i32) {
    %c0_i32 = arith.constant 0 : i32
    %c0_i32_0 = arith.constant 0 : i32
    %c0_i32_1 = arith.constant 0 : i32
    return %c0_i32, %c0_i32_0 : i32, i32
  }
  func.func @transform_2(%arg0: i32) -> (i32, i32) {
    %c0_i32 = arith.constant 0 : i32
    %c0_i32_0 = arith.constant 0 : i32
    %c0_i32_1 = arith.constant 0 : i32
    return %c0_i32, %c0_i32_0 : i32, i32
  }
  func.func @transform_3(%arg0: i32) -> (i32, i32) {
    %c0_i32 = arith.constant 0 : i32
    %c0_i32_0 = arith.constant 0 : i32
    %c0_i32_1 = arith.constant 0 : i32
    return %c0_i32, %c0_i32_0 : i32, i32
  }
  func.func @transform_4(%arg0: i32) -> (i32, i32) {
    %c0_i32 = arith.constant 0 : i32
    %c0_i32_0 = arith.constant 0 : i32
    %c0_i32_1 = arith.constant 0 : i32
    return %c0_i32, %c0_i32_0 : i32, i32
  }
  func.func @transform_5(%arg0: i32) -> (i32, i32) {
    %c0_i32 = arith.constant 0 : i32
    %c0_i32_0 = arith.constant 0 : i32
    return %arg0, %c0_i32 : i32, i32
  }
}

</mosaic_0001>

<llo_original>
// kernel: tpu_custom_call.1
$region0: #{tpu_custom_call.1}
  #allocation0 [shape = 'u32[]', space=smem, size = 0x4, offset = 0x4, fixed_abs, tag = 'smem constant byte address 0x4 - core index']
  #allocation1 [shape = 'u32[144,128]{1,0:T(1,128)}', space=vmem, size = 0x12000, scoped, tag = 'internal scratch']
  #allocation2 [shape = 'f32[8,16]{1,0:T(8,128)}', space=vmem, size = 0x1000, scoped, tag = 'scratch operand']
  %s0 = inlined_call_operand.vmem [shape: f32[13,32], index: 0, kind: input, shape index: {}]
  %s1 = inlined_call_operand.vmem [shape: f32[32,64], index: 1, kind: input, shape index: {}]
  %s2 = inlined_call_operand.vmem [shape: f32[1,64], index: 2, kind: input, shape index: {}]
  %s3 = inlined_call_operand.vmem [shape: f32[64,16], index: 3, kind: input, shape index: {}]
  %s4 = inlined_call_operand.vmem [shape: f32[1,16], index: 4, kind: input, shape index: {}]
  %s5 = inlined_call_operand.hbm [shape: f32[13,16], index: 5, kind: output, shape index: {}]
  %s6 = sld [smem:[#allocation0]]
  $region53: #{tpu_custom_call.1} parent=0
    _
  %s8 = ssub.s32 1, %s6
  %s9 = scalar_select 0, %s8, %s6
  $region1: #{tpu_custom_call.1} parent=0
    #allocation3 [shape = 'u8[8192]{0}', space=vmem, size = 0x2000, scoped, tag = 'output window, operand 0']
    #allocation4 [shape = 's32[2]{0}', space=sflag, size = 0x8, scoped, tag = 'scoped memory for tpu_custom_call.1']
    %10 = vsyncpa [#allocation4], 0
    %s11 = scalar_lea.sflag [#allocation4], 1
    %12 = vsyncpa %s11, 0
    loop: start=0, step=1, limit=4
    $region2: #{tpu_custom_call.1} parent=1 // loop_pre_header
      _
    $region3: #{tpu_custom_call.1} parent=1 // loop_header
      %s14 = sphi 0, %s18
      %p15 = scmp.ge.s32.totalorder %s14, 4
      %s24 = sphi 0, %s26
      %s27 = sphi 0, %s24
      %s28 = sphi 0, %s27
      %s44 = sphi 0, %s28
      %s48 = sphi 0, %s48
      %s50 = sphi 0, %s48
      %s51 = sphi 0, %s50
      %s65 = sphi 0, %s51
      %s69 = sphi 0, %s69
      %s71 = sphi 0, %s69
      %s72 = sphi 0, %s71
      %s86 = sphi 0, %s72
      %s90 = sphi 0, %s90
      %s92 = sphi 0, %s90
      %s93 = sphi 0, %s92
      %s107 = sphi 0, %s93
      %s111 = sphi 0, %s111
      %s113 = sphi 0, %s111
      %s114 = sphi 0, %s113
      %s128 = sphi 0, %s114
      %s134 = sphi 0, %s136
      %s137 = sphi 0, %s134
      %s138 = sphi 0, %s137
      %s154 = sphi 0, %s138
    $region4: #{tpu_custom_call.1} parent=1 // loop_header_branch
      %17 = sbr.rel (%p15) target = $region8
    $region5: #{tpu_custom_call.1} parent=1 // loop_body
      %s19 = ssub.s32 %s14, 1
      %s20 = ssub.s32 %s14, 2
      %s21 = sadd.s32 %s14, 1
      %s22 = ssub.s32 %s14, %s21
      %p23 = scmp.eq.s32.totalorder %s22, 0
      %s25 = sadd.s32 %s24, 1
      %s26 = scalar_select %p23, %s24, %s25
      %p29 = pneg %p23
      %p30 = scmp.eq.s32.totalorder %s14, 1
      %p31 = por %p29, %p30
      %p32 = scmp.ne.s32.totalorder %s24, %s27
      %p33 = scmp.eq.s32.totalorder %s14, 0
      %p34 = por %p32, %p33
      %p35 = scmp.ne.s32.totalorder %s24, %s27
      %p36 = scmp.eq.s32.totalorder %s19, 1
      %p37 = por %p35, %p36
      %p38 = scmp.ne.s32.totalorder %s27, %s28
      %p39 = scmp.eq.s32.totalorder %s19, 0
      %p40 = por %p38, %p39
      %p41 = scmp.ne.s32.totalorder %s27, %s28
      %p42 = scmp.eq.s32.totalorder %s20, 1
      %p43 = por %p41, %p42
      %p45 = scmp.ne.s32.totalorder %s28, %s44
      %p46 = scmp.eq.s32.totalorder %s20, 0
      %p47 = por %p45, %p46
      %s49 = sadd.s32 %s48, 1
      %p52 = scmp.eq.s32.totalorder %s14, 1
      %p53 = scmp.ne.s32.totalorder %s48, %s50
      %p54 = scmp.eq.s32.totalorder %s14, 0
      %p55 = por %p53, %p54
      %p56 = scmp.ne.s32.totalorder %s48, %s50
      %p57 = scmp.eq.s32.totalorder %s19, 1
      %p58 = por %p56, %p57
      %p59 = scmp.ne.s32.totalorder %s50, %s51
      %p60 = scmp.eq.s32.totalorder %s19, 0
      %p61 = por %p59, %p60
      %p62 = scmp.ne.s32.totalorder %s50, %s51
      %p63 = scmp.eq.s32.totalorder %s20, 1
      %p64 = por %p62, %p63
      %p66 = scmp.ne.s32.totalorder %s51, %s65
      %p67 = scmp.eq.s32.totalorder %s20, 0
      %p68 = por %p66, %p67
      %s70 = sadd.s32 %s69, 1
      %p73 = scmp.eq.s32.totalorder %s14, 1
      %p74 = scmp.ne.s32.totalorder %s69, %s71
      %p75 = scmp.eq.s32.totalorder %s14, 0
      %p76 = por %p74, %p75
      %p77 = scmp.ne.s32.totalorder %s69, %s71
      %p78 = scmp.eq.s32.totalorder %s19, 1
      %p79 = por %p77, %p78
      %p80 = scmp.ne.s32.totalorder %s71, %s72
      %p81 = scmp.eq.s32.totalorder %s19, 0
      %p82 = por %p80, %p81
      %p83 = scmp.ne.s32.totalorder %s71, %s72
      %p84 = scmp.eq.s32.totalorder %s20, 1
      %p85 = por %p83, %p84
      %p87 = scmp.ne.s32.totalorder %s72, %s86
      %p88 = scmp.eq.s32.totalorder %s20, 0
      %p89 = por %p87, %p88
      %s91 = sadd.s32 %s90, 1
      %p94 = scmp.eq.s32.totalorder %s14, 1
      %p95 = scmp.ne.s32.totalorder %s90, %s92
      %p96 = scmp.eq.s32.totalorder %s14, 0
      %p97 = por %p95, %p96
      %p98 = scmp.ne.s32.totalorder %s90, %s92
      %p99 = scmp.eq.s32.totalorder %s19, 1
      %p100 = por %p98, %p99
      %p101 = scmp.ne.s32.totalorder %s92, %s93
      %p102 = scmp.eq.s32.totalorder %s19, 0
      %p103 = por %p101, %p102
      %p104 = scmp.ne.s32.totalorder %s92, %s93
      %p105 = scmp.eq.s32.totalorder %s20, 1
      %p106 = por %p104, %p105
      %p108 = scmp.ne.s32.totalorder %s93, %s107
      %p109 = scmp.eq.s32.totalorder %s20, 0
      %p110 = por %p108, %p109
      %s112 = sadd.s32 %s111, 1
      %p115 = scmp.eq.s32.totalorder %s14, 1
      %p116 = scmp.ne.s32.totalorder %s111, %s113
      %p117 = scmp.eq.s32.totalorder %s14, 0
      %p118 = por %p116, %p117
      %p119 = scmp.ne.s32.totalorder %s111, %s113
      %p120 = scmp.eq.s32.totalorder %s19, 1
      %p121 = por %p119, %p120
      %p122 = scmp.ne.s32.totalorder %s113, %s114
      %p123 = scmp.eq.s32.totalorder %s19, 0
      %p124 = por %p122, %p123
      %p125 = scmp.ne.s32.totalorder %s113, %s114
      %p126 = scmp.eq.s32.totalorder %s20, 1
      %p127 = por %p125, %p126
      %p129 = scmp.ne.s32.totalorder %s114, %s128
      %p130 = scmp.eq.s32.totalorder %s20, 0
      %p131 = por %p129, %p130
      %s132 = ssub.s32 %s14, %s21
      %p133 = scmp.eq.s32.totalorder %s132, 0
      %s135 = sadd.s32 %s134, 1
      %s136 = scalar_select %p133, %s134, %s135
      %p139 = pneg %p133
      %p140 = scmp.eq.s32.totalorder %s14, 1
      %p141 = por %p139, %p140
      %p142 = scmp.ne.s32.totalorder %s134, %s137
      %p143 = scmp.eq.s32.totalorder %s14, 0
      %p144 = por %p142, %p143
      %p145 = scmp.ne.s32.totalorder %s134, %s137
      %p146 = scmp.eq.s32.totalorder %s19, 1
      %p147 = por %p145, %p146
      %p148 = scmp.ne.s32.totalorder %s137, %s138
      %p149 = scmp.eq.s32.totalorder %s19, 0
      %p150 = por %p148, %p149
      %p151 = scmp.ne.s32.totalorder %s137, %s138
      %p152 = scmp.eq.s32.totalorder %s20, 1
      %p153 = por %p151, %p152
      %p155 = scmp.ne.s32.totalorder %s138, %s154
      %p156 = scmp.eq.s32.totalorder %s20, 0
      %p157 = por %p155, %p156
      %p158 = scmp.le.s32.totalorder 1, %s14
      %p159 = scmp.lt.s32.totalorder %s14, 3
      %p160 = pnand %p158, %p159
      %p161 = pneg %p160
      // Predicated region
      $region9: #{tpu_custom_call.1} parent=5 // pred_check
        _
      $region10: #{tpu_custom_call.1} parent=5 // pred_check_branch
        %163 = sbr.rel (%p160) target = $region12
      $region11: #{tpu_custom_call.1} parent=5 // pred_region
        %s164 = ssub.s32 %s14, 1
        // Predicated region
        $region13: #{tpu_custom_call.1} parent=11 // pred_check
          %p165 = pneg %p61
        $region14: #{tpu_custom_call.1} parent=11 // pred_check_branch
          %167 = sbr.rel (%p165) target = $region16
        $region15: #{tpu_custom_call.1} parent=11 // pred_region
          _
        $region16: #{tpu_custom_call.1} parent=11 // pred_fallthru
          _
        // Predicated region
        $region17: #{tpu_custom_call.1} parent=11 // pred_check
          %p168 = pneg %p82
        $region18: #{tpu_custom_call.1} parent=11 // pred_check_branch
          %170 = sbr.rel (%p168) target = $region20
        $region19: #{tpu_custom_call.1} parent=11 // pred_region
          _
        $region20: #{tpu_custom_call.1} parent=11 // pred_fallthru
          _
        // Predicated region
        $region21: #{tpu_custom_call.1} parent=11 // pred_check
          %p171 = pneg %p103
        $region22: #{tpu_custom_call.1} parent=11 // pred_check_branch
          %173 = sbr.rel (%p171) target = $region24
        $region23: #{tpu_custom_call.1} parent=11 // pred_region
          _
        $region24: #{tpu_custom_call.1} parent=11 // pred_fallthru
          _
        // Predicated region
        $region25: #{tpu_custom_call.1} parent=11 // pred_check
          %p174 = pneg %p124
        $region26: #{tpu_custom_call.1} parent=11 // pred_check_branch
          %176 = sbr.rel (%p174) target = $region28
        $region27: #{tpu_custom_call.1} parent=11 // pred_region
          _
        $region28: #{tpu_custom_call.1} parent=11 // pred_fallthru
          _
      $region12: #{tpu_custom_call.1} parent=5 // pred_fallthru
        _
      %p177 = scmp.lt.s32.totalorder %s14, 2
      // Predicated region
      $region29: #{tpu_custom_call.1} parent=5 // pred_check
        %p178 = pneg %p177
      $region30: #{tpu_custom_call.1} parent=5 // pred_check_branch
        %180 = sbr.rel (%p178) target = $region32
      $region31: #{tpu_custom_call.1} parent=5 // pred_region
        // Predicated region
        $region33: #{tpu_custom_call.1} parent=31 // pred_check
          %p181 = pneg %p34
        $region34: #{tpu_custom_call.1} parent=31 // pred_check_branch
          %183 = sbr.rel (%p181) target = $region36
        $region35: #{tpu_custom_call.1} parent=31 // pred_region
          %p184 = scmp.lt.s32.totalorder %s14, 1
          %s185 = scalar_select %p184, %s14, 1
          %s186 = smul.addr %s185, 8
          %s187 = scalar_lea.vmem %s0, %s186
        $region36: #{tpu_custom_call.1} parent=31 // pred_fallthru
          _
      $region32: #{tpu_custom_call.1} parent=5 // pred_fallthru
        _
      %p188 = scmp.le.s32.totalorder 1, %s14
      %p189 = scmp.lt.s32.totalorder %s14, 3
      %p190 = pnand %p188, %p189
      %p191 = pneg %p190
      // Predicated region
      $region37: #{tpu_custom_call.1} parent=5 // pred_check
        _
      $region38: #{tpu_custom_call.1} parent=5 // pred_check_branch
        %193 = sbr.rel (%p190) target = $region40
      $region39: #{tpu_custom_call.1} parent=5 // pred_region
        %s194 = ssub.s32 %s14, 1
        %p195 = scmp.lt.s32.totalorder %s19, 1
        %s196 = scalar_select %p195, %s19, 1
        %s197 = smul.addr %s196, 8
        %s198 = scalar_lea.vmem %s0, %s197
        %p199 = pneg %p40
        %p200 = pneg %p37
        %p201 = pneg %p61
        %p202 = pneg %p58
        %p203 = pneg %p82
        %p204 = pneg %p79
        %p205 = pneg %p103
        %p206 = pneg %p100
        %p207 = pneg %p124
        %p208 = pneg %p121
        %p209 = pneg %p150
        %p210 = pneg %p147
        %s211 = sand.u32 %s137, 1
        %s212 = scalar_lea.sflag [#allocation4], %s211
        %s213 = sand.u32 %s137, 1
        %s214 = smul.addr %s213, 8
        %s215 = scalar_lea.vmem [#allocation3], %s214
        %p216 = scmp.lt.s32.totalorder %s19, 1
        %s217 = scalar_select %p216, %s19, 1
        %s218 = smul.addr %s217, 8
        %s219 = scalar_lea.vmem %s0, %s218
        %v220 = vld [vmem:[%s219] sm:$0xff]
        %v221 = vld [vmem:[%s4] sm:$0x1]
        %v223 = vlaneseq
        %v224 = vshrl.u32 %v223, 7
        %v225 = vsub.s32 0, %v224
        %v226 = vrot.slane %v221, %v225
        %vm228 = vcmask 130048
        %229 = vst.msk [vmem:[#allocation2] sm:$0xff] %vm228, %v226
        %v230 = vld [vmem:[%s1] sm:$0xff]
        %v231 = vld [vmem:[%s1 + $0x8] sm:$0xff]
        %v232 = vld [vmem:[%s1 + $0x10] sm:$0xff]
        %v233 = vld [vmem:[%s1 + $0x18] sm:$0xff]
        %v234 = vld [vmem:[%s2] sm:$0x1]
        %v236 = vlaneseq
        %v237 = vshrl.u32 %v236, 7
        %v238 = vsub.s32 0, %v237
        %v239 = vrot.slane %v234, %v238
        %vm241 = vcmask 261120
        %v243 = vsel %vm241, %v220, 0
        %245 = vmatprep.subr.mxu0 0.0
        %246 = vmatpush1.msra.mxu0 %v230
        %247 = vmatprep.subr.mxu0 0.0
        %248 = vmatpush1.msra.mxu0 %v231
        %249 = vmatprep.subr.mxu0 0.0
        %250 = vmatpush1.msra.mxu0 %v232
        %251 = vmatprep.subr.mxu0 0.0
        %252 = vmatpush1.msra.mxu0 %v233
        %253 = vmatprep.subr.mxu0 0.0
        %254 = vmatpush1.msra.mxu0 0.0
        %255 = vmatprep.subr.mxu0 0.0
        %256 = vmatpush1.msra.mxu0 0.0
        %257 = vmatprep.subr.mxu0 0.0
        %258 = vmatpush1.msra.mxu0 0.0
        %259 = vmatprep.subr.mxu0 0.0
        %260 = vmatpush1.msra.mxu0 0.0
        %261 = vmatprep.subr.mxu0 0.0
        %262 = vmatpush1.msra.mxu0 0.0
        %263 = vmatprep.subr.mxu0 0.0
        %264 = vmatpush1.msra.mxu0 0.0
        %265 = vmatprep.subr.mxu0 0.0
        %266 = vmatpush1.msra.mxu0 0.0
        %267 = vmatprep.subr.mxu0 0.0
        %268 = vmatpush1.msra.mxu0 0.0
        %269 = vmatprep.subr.mxu0 0.0
        %270 = vmatpush1.msra.mxu0 0.0
        %271 = vmatprep.subr.mxu0 0.0
        %272 = vmatpush1.msra.mxu0 0.0
        %273 = vmatprep.subr.mxu0 0.0
        %274 = vmatpush1.msra.mxu0 0.0
        %275 = vmatprep.subr.mxu0 0.0
        %276 = vmatpush1.msra.mxu0 0.0
        %277 = vmatprep.subr.mxu0 0.0
        %278 = vmatpush1.msra.mxu0 0.0
        %279 = vmatprep.subr.mxu0 0.0
        %280 = vmatpush1.msra.mxu0 0.0
        %281 = vmatprep.subr.mxu0 0.0
        %282 = vmatpush1.msra.mxu0 0.0
        %283 = vmatprep.subr.mxu0 0.0
        %284 = vmatpush1.msra.mxu0 0.0
        %285 = vmatprep.subr.mxu0 0.0
        %286 = vmatpush1.msra.mxu0 0.0
        %287 = vmatprep.subr.mxu0 0.0
        %288 = vmatpush1.msra.mxu0 0.0
        %289 = vmatprep.subr.mxu0 0.0
        %290 = vmatpush1.msra.mxu0 0.0
        %291 = vmatprep.subr.mxu0 0.0
        %292 = vmatpush1.msra.mxu0 0.0
        %293 = vmatprep.subr.mxu0 0.0
        %294 = vmatpush1.msra.mxu0 0.0
        %295 = vmatprep.subr.mxu0 0.0
        %296 = vmatpush1.msra.mxu0 0.0
        %297 = vmatprep.subr.mxu0 0.0
        %298 = vmatpush1.msra.mxu0 0.0
        %299 = vmatprep.subr.mxu0 0.0
        %300 = vmatpush1.msra.mxu0 0.0
        %301 = vmatprep.subr.mxu0 0.0
        %302 = vmatpush1.msra.mxu0 0.0
        %303 = vmatprep.subr.mxu0 0.0
        %304 = vmatpush1.msra.mxu0 0.0
        %305 = vmatprep.subr.mxu0 0.0
        %306 = vmatpush1.msra.mxu0 0.0
        %307 = vmatprep.subr.mxu0 0.0
        %308 = vmatpush1.msra.mxu0 0.0
        %309 = vmatprep.mubr.f32.mxu0 0.0
        %310 = vmatmul.mubr.f32.gmra.mrb[0].mxu0 %v243
        %v311 = vpop.f32.mrb[0].mxu0
        %v312 = vadd.f32 %v239, %v311
        %v313 = vpop.f32.mrb[0].mxu0
        %314 = vdwg.mxu0
        %v315 = vmax.f32 %v312, 0.0
        %v316 = vld [vmem:[#allocation2] sm:$0xff]
        %v317 = vld [vmem:[%s3] sm:$0xff]
        %v318 = vld [vmem:[%s3 + $0x8] sm:$0xff]
        %v319 = vld [vmem:[%s3 + $0x10] sm:$0xff]
        %v320 = vld [vmem:[%s3 + $0x18] sm:$0xff]
        %v321 = vld [vmem:[%s3 + $0x20] sm:$0xff]
        %v322 = vld [vmem:[%s3 + $0x28] sm:$0xff]
        %v323 = vld [vmem:[%s3 + $0x30] sm:$0xff]
        %v324 = vld [vmem:[%s3 + $0x38] sm:$0xff]
        %vm325 = vcmask 523264
        %v327 = vsel %vm325, %v315, 0
        %329 = vmatprep.subr.mxu0 0.0
        %330 = vmatpush1.msra.mxu0 %v317
        %331 = vmatprep.subr.mxu0 0.0
        %332 = vmatpush1.msra.mxu0 %v318
        %333 = vmatprep.subr.mxu0 0.0
        %334 = vmatpush1.msra.mxu0 %v319
        %335 = vmatprep.subr.mxu0 0.0
        %336 = vmatpush1.msra.mxu0 %v320
        %337 = vmatprep.subr.mxu0 0.0
        %338 = vmatpush1.msra.mxu0 %v321
        %339 = vmatprep.subr.mxu0 0.0
        %340 = vmatpush1.msra.mxu0 %v322
        %341 = vmatprep.subr.mxu0 0.0
        %342 = vmatpush1.msra.mxu0 %v323
        %343 = vmatprep.subr.mxu0 0.0
        %344 = vmatpush1.msra.mxu0 %v324
        %345 = vmatprep.subr.mxu0 0.0
        %346 = vmatpush1.msra.mxu0 0.0
        %347 = vmatprep.subr.mxu0 0.0
        %348 = vmatpush1.msra.mxu0 0.0
        %349 = vmatprep.subr.mxu0 0.0
        %350 = vmatpush1.msra.mxu0 0.0
        %351 = vmatprep.subr.mxu0 0.0
        %352 = vmatpush1.msra.mxu0 0.0
        %353 = vmatprep.subr.mxu0 0.0
        %354 = vmatpush1.msra.mxu0 0.0
        %355 = vmatprep.subr.mxu0 0.0
        %356 = vmatpush1.msra.mxu0 0.0
        %357 = vmatprep.subr.mxu0 0.0
        %358 = vmatpush1.msra.mxu0 0.0
        %359 = vmatprep.subr.mxu0 0.0
        %360 = vmatpush1.msra.mxu0 0.0
        %361 = vmatprep.subr.mxu0 0.0
        %362 = vmatpush1.msra.mxu0 0.0
        %363 = vmatprep.subr.mxu0 0.0
        %364 = vmatpush1.msra.mxu0 0.0
        %365 = vmatprep.subr.mxu0 0.0
        %366 = vmatpush1.msra.mxu0 0.0
        %367 = vmatprep.subr.mxu0 0.0
        %368 = vmatpush1.msra.mxu0 0.0
        %369 = vmatprep.subr.mxu0 0.0
        %370 = vmatpush1.msra.mxu0 0.0
        %371 = vmatprep.subr.mxu0 0.0
        %372 = vmatpush1.msra.mxu0 0.0
        %373 = vmatprep.subr.mxu0 0.0
        %374 = vmatpush1.msra.mxu0 0.0
        %375 = vmatprep.subr.mxu0 0.0
        %376 = vmatpush1.msra.mxu0 0.0
        %377 = vmatprep.subr.mxu0 0.0
        %378 = vmatpush1.msra.mxu0 0.0
        %379 = vmatprep.subr.mxu0 0.0
        %380 = vmatpush1.msra.mxu0 0.0
        %381 = vmatprep.subr.mxu0 0.0
        %382 = vmatpush1.msra.mxu0 0.0
        %383 = vmatprep.subr.mxu0 0.0
        %384 = vmatpush1.msra.mxu0 0.0
        %385 = vmatprep.subr.mxu0 0.0
        %386 = vmatpush1.msra.mxu0 0.0
        %387 = vmatprep.subr.mxu0 0.0
        %388 = vmatpush1.msra.mxu0 0.0
        %389 = vmatprep.subr.mxu0 0.0
        %390 = vmatpush1.msra.mxu0 0.0
        %391 = vmatprep.subr.mxu0 0.0
        %392 = vmatpush1.msra.mxu0 0.0
        %393 = vmatprep.mubr.f32.mxu0 0.0
        %394 = vmatmul.mubr.f32.gmra.mrb[0].mxu0 %v327
        %v395 = vpop.f32.mrb[0].mxu0
        %v396 = vadd.f32 0.0, %v395
        %v397 = vpop.f32.mrb[0].mxu0
        %398 = vdwg.mxu0
        %v399 = vadd.f32 %v316, %v396
        %400 = vst.msk [vmem:[#allocation2] sm:$0xff] %vm228, %v399
        %v401 = vld [vmem:[#allocation2] sm:$0xff]
        %402 = vst.msk [vmem:[%s215] sm:$0xff] %vm228, %v401
        %s403 = sand.u32 %s137, 1
        %s404 = scalar_lea.sflag [#allocation4], %s403
        %s405 = sand.u32 %s137, 1
        %s406 = smul.addr %s405, 8
        %s407 = scalar_lea.vmem [#allocation3], %s406
        // Predicated region
        $region41: #{tpu_custom_call.1} parent=39 // pred_check
          %p408 = pneg %p147
        $region42: #{tpu_custom_call.1} parent=39 // pred_check_branch
          %410 = sbr.rel (%p408) target = $region44
        $region43: #{tpu_custom_call.1} parent=39 // pred_region
          %s412 = ssub.s32 128, 128
          %413 = vsyncadd %s404, %s412
          %s414 = smul.addr %s19, 128
          %s415 = scalar_lea.hbm %s5, %s414
          %s417 = sshll.u32 %s407, 4
          %s418 = int_to_ptr.vmem [resolvable:$true] %s417
          %420 = dma.vmem_to_hbm [thread:$0]  %s418, 128, %s415, %s404
        $region44: #{tpu_custom_call.1} parent=39 // pred_fallthru
          _
      $region40: #{tpu_custom_call.1} parent=5 // pred_fallthru
        _
      %p421 = scmp.le.s32.totalorder 2, %s14
      // Predicated region
      $region45: #{tpu_custom_call.1} parent=5 // pred_check
        %p422 = pneg %p421
      $region46: #{tpu_custom_call.1} parent=5 // pred_check_branch
        %424 = sbr.rel (%p422) target = $region48
      $region47: #{tpu_custom_call.1} parent=5 // pred_region
        %s425 = ssub.s32 %s14, 2
        // Predicated region
        $region49: #{tpu_custom_call.1} parent=47 // pred_check
          %p426 = pneg %p153
        $region50: #{tpu_custom_call.1} parent=47 // pred_check_branch
          %428 = sbr.rel (%p426) target = $region52
        $region51: #{tpu_custom_call.1} parent=47 // pred_region
          %s429 = sand.u32 %s138, 1
          %s430 = scalar_lea.sflag [#allocation4], %s429
          %s431 = sand.u32 %s138, 1
          %s432 = smul.addr %s431, 8
          %s433 = scalar_lea.vmem [#allocation3], %s432
          %434 = dma.done %s430, 128
        $region52: #{tpu_custom_call.1} parent=47 // pred_fallthru
          _
      $region48: #{tpu_custom_call.1} parent=5 // pred_fallthru
        _
    $region6: #{tpu_custom_call.1} parent=1 // loop_footer
      %s18 = sadd.s32 1, %s14
    $region7: #{tpu_custom_call.1} parent=1 // loop_footer_branch
      %13 = sbr.rel target = $region3
    $region8: #{tpu_custom_call.1} parent=1 // loop_exit
      _
    %435 = vsyncpa [#allocation4], 1
    %s436 = scalar_lea.sflag [#allocation4], 1
    %437 = vsyncpa %s436, 1

// kernel: tpu_custom_call.1
$region0: #{tpu_custom_call.1}
  #allocation0 [shape = 'u32[]', space=smem, size = 0x4, offset = 0x4, fixed_abs, tag = 'smem constant byte address 0x4 - core index']
  #allocation1 [shape = 'u32[144,128]{1,0:T(1,128)}', space=vmem, size = 0x12000, scoped, tag = 'internal scratch']
  #allocation2 [shape = 'f32[8,16]{1,0:T(8,128)}', space=vmem, size = 0x1000, scoped, tag = 'scratch operand']
  %s0 = inlined_call_operand.vmem [shape: f32[13,32], index: 0, kind: input, shape index: {}]
  %s1 = inlined_call_operand.vmem [shape: f32[32,64], index: 1, kind: input, shape index: {}]
  %s2 = inlined_call_operand.vmem [shape: f32[1,64], index: 2, kind: input, shape index: {}]
  %s3 = inlined_call_operand.vmem [shape: f32[64,16], index: 3, kind: input, shape index: {}]
  %s4 = inlined_call_operand.vmem [shape: f32[1,16], index: 4, kind: input, shape index: {}]
  %s5 = inlined_call_operand.hbm [shape: f32[13,16], index: 5, kind: output, shape index: {}]
  %s6 = sld [smem:[#allocation0]]
  $region53: #{tpu_custom_call.1} parent=0
    _
  %s8 = ssub.s32 1, %s6
  %s9 = scalar_select 0, %s8, %s6
  $region1: #{tpu_custom_call.1} parent=0
    #allocation3 [shape = 'u8[8192]{0}', space=vmem, size = 0x2000, scoped, tag = 'output window, operand 0']
    #allocation4 [shape = 's32[2]{0}', space=sflag, size = 0x8, scoped, tag = 'scoped memory for tpu_custom_call.1']
    %10 = vsyncpa [#allocation4], 0
    %s11 = scalar_lea.sflag [#allocation4], 1
    %12 = vsyncpa %s11, 0
    loop: start=0, step=1, limit=4
    $region2: #{tpu_custom_call.1} parent=1 // loop_pre_header
      _
    $region3: #{tpu_custom_call.1} parent=1 // loop_header
      %s14 = sphi 0, %s18
      %p15 = scmp.ge.s32.totalorder %s14, 4
      %s24 = sphi 0, %s26
      %s27 = sphi 0, %s24
      %s28 = sphi 0, %s27
      %s44 = sphi 0, %s28
      %s48 = sphi 0, %s48
      %s50 = sphi 0, %s48
      %s51 = sphi 0, %s50
      %s65 = sphi 0, %s51
      %s69 = sphi 0, %s69
      %s71 = sphi 0, %s69
      %s72 = sphi 0, %s71
      %s86 = sphi 0, %s72
      %s90 = sphi 0, %s90
      %s92 = sphi 0, %s90
      %s93 = sphi 0, %s92
      %s107 = sphi 0, %s93
      %s111 = sphi 0, %s111
      %s113 = sphi 0, %s111
      %s114 = sphi 0, %s113
      %s128 = sphi 0, %s114
      %s134 = sphi 0, %s136
      %s137 = sphi 0, %s134
      %s138 = sphi 0, %s137
      %s154 = sphi 0, %s138
    $region4: #{tpu_custom_call.1} parent=1 // loop_header_branch
      %17 = sbr.rel (%p15) target = $region8
    $region5: #{tpu_custom_call.1} parent=1 // loop_body
      %s19 = ssub.s32 %s14, 1
      %s20 = ssub.s32 %s14, 2
      %s21 = sadd.s32 %s14, 1
      %s22 = ssub.s32 %s14, %s21
      %p23 = scmp.eq.s32.totalorder %s22, 0
      %s25 = sadd.s32 %s24, 1
      %s26 = scalar_select %p23, %s24, %s25
      %p29 = pneg %p23
      %p30 = scmp.eq.s32.totalorder %s14, 1
      %p31 = por %p29, %p30
      %p32 = scmp.ne.s32.totalorder %s24, %s27
      %p33 = scmp.eq.s32.totalorder %s14, 0
      %p34 = por %p32, %p33
      %p35 = scmp.ne.s32.totalorder %s24, %s27
      %p36 = scmp.eq.s32.totalorder %s19, 1
      %p37 = por %p35, %p36
      %p38 = scmp.ne.s32.totalorder %s27, %s28
      %p39 = scmp.eq.s32.totalorder %s19, 0
      %p40 = por %p38, %p39
      %p41 = scmp.ne.s32.totalorder %s27, %s28
      %p42 = scmp.eq.s32.totalorder %s20, 1
      %p43 = por %p41, %p42
      %p45 = scmp.ne.s32.totalorder %s28, %s44
      %p46 = scmp.eq.s32.totalorder %s20, 0
      %p47 = por %p45, %p46
      %s49 = sadd.s32 %s48, 1
      %p52 = scmp.eq.s32.totalorder %s14, 1
      %p53 = scmp.ne.s32.totalorder %s48, %s50
      %p54 = scmp.eq.s32.totalorder %s14, 0
      %p55 = por %p53, %p54
      %p56 = scmp.ne.s32.totalorder %s48, %s50
      %p57 = scmp.eq.s32.totalorder %s19, 1
      %p58 = por %p56, %p57
      %p59 = scmp.ne.s32.totalorder %s50, %s51
      %p60 = scmp.eq.s32.totalorder %s19, 0
      %p61 = por %p59, %p60
      %p62 = scmp.ne.s32.totalorder %s50, %s51
      %p63 = scmp.eq.s32.totalorder %s20, 1
      %p64 = por %p62, %p63
      %p66 = scmp.ne.s32.totalorder %s51, %s65
      %p67 = scmp.eq.s32.totalorder %s20, 0
      %p68 = por %p66, %p67
      %s70 = sadd.s32 %s69, 1
      %p73 = scmp.eq.s32.totalorder %s14, 1
      %p74 = scmp.ne.s32.totalorder %s69, %s71
      %p75 = scmp.eq.s32.totalorder %s14, 0
      %p76 = por %p74, %p75
      %p77 = scmp.ne.s32.totalorder %s69, %s71
      %p78 = scmp.eq.s32.totalorder %s19, 1
      %p79 = por %p77, %p78
      %p80 = scmp.ne.s32.totalorder %s71, %s72
      %p81 = scmp.eq.s32.totalorder %s19, 0
      %p82 = por %p80, %p81
      %p83 = scmp.ne.s32.totalorder %s71, %s72
      %p84 = scmp.eq.s32.totalorder %s20, 1
      %p85 = por %p83, %p84
      %p87 = scmp.ne.s32.totalorder %s72, %s86
      %p88 = scmp.eq.s32.totalorder %s20, 0
      %p89 = por %p87, %p88
      %s91 = sadd.s32 %s90, 1
      %p94 = scmp.eq.s32.totalorder %s14, 1
      %p95 = scmp.ne.s32.totalorder %s90, %s92
      %p96 = scmp.eq.s32.totalorder %s14, 0
      %p97 = por %p95, %p96
      %p98 = scmp.ne.s32.totalorder %s90, %s92
      %p99 = scmp.eq.s32.totalorder %s19, 1
      %p100 = por %p98, %p99
      %p101 = scmp.ne.s32.totalorder %s92, %s93
      %p102 = scmp.eq.s32.totalorder %s19, 0
      %p103 = por %p101, %p102
      %p104 = scmp.ne.s32.totalorder %s92, %s93
      %p105 = scmp.eq.s32.totalorder %s20, 1
      %p106 = por %p104, %p105
      %p108 = scmp.ne.s32.totalorder %s93, %s107
      %p109 = scmp.eq.s32.totalorder %s20, 0
      %p110 = por %p108, %p109
      %s112 = sadd.s32 %s111, 1
      %p115 = scmp.eq.s32.totalorder %s14, 1
      %p116 = scmp.ne.s32.totalorder %s111, %s113
      %p117 = scmp.eq.s32.totalorder %s14, 0
      %p118 = por %p116, %p117
      %p119 = scmp.ne.s32.totalorder %s111, %s113
      %p120 = scmp.eq.s32.totalorder %s19, 1
      %p121 = por %p119, %p120
      %p122 = scmp.ne.s32.totalorder %s113, %s114
      %p123 = scmp.eq.s32.totalorder %s19, 0
      %p124 = por %p122, %p123
      %p125 = scmp.ne.s32.totalorder %s113, %s114
      %p126 = scmp.eq.s32.totalorder %s20, 1
      %p127 = por %p125, %p126
      %p129 = scmp.ne.s32.totalorder %s114, %s128
      %p130 = scmp.eq.s32.totalorder %s20, 0
      %p131 = por %p129, %p130
      %s132 = ssub.s32 %s14, %s21
      %p133 = scmp.eq.s32.totalorder %s132, 0
      %s135 = sadd.s32 %s134, 1
      %s136 = scalar_select %p133, %s134, %s135
      %p139 = pneg %p133
      %p140 = scmp.eq.s32.totalorder %s14, 1
      %p141 = por %p139, %p140
      %p142 = scmp.ne.s32.totalorder %s134, %s137
      %p143 = scmp.eq.s32.totalorder %s14, 0
      %p144 = por %p142, %p143
      %p145 = scmp.ne.s32.totalorder %s134, %s137
      %p146 = scmp.eq.s32.totalorder %s19, 1
      %p147 = por %p145, %p146
      %p148 = scmp.ne.s32.totalorder %s137, %s138
      %p149 = scmp.eq.s32.totalorder %s19, 0
      %p150 = por %p148, %p149
      %p151 = scmp.ne.s32.totalorder %s137, %s138
      %p152 = scmp.eq.s32.totalorder %s20, 1
      %p153 = por %p151, %p152
      %p155 = scmp.ne.s32.totalorder %s138, %s154
      %p156 = scmp.eq.s32.totalorder %s20, 0
      %p157 = por %p155, %p156
      %p158 = scmp.le.s32.totalorder 1, %s14
      %p159 = scmp.lt.s32.totalorder %s14, 3
      %p160 = pnand %p158, %p159
      %p161 = pneg %p160
      // Predicated region
      $region9: #{tpu_custom_call.1} parent=5 // pred_check
        _
      $region10: #{tpu_custom_call.1} parent=5 // pred_check_branch
        %163 = sbr.rel (%p160) target = $region12
      $region11: #{tpu_custom_call.1} parent=5 // pred_region
        %s164 = ssub.s32 %s14, 1
        // Predicated region
        $region13: #{tpu_custom_call.1} parent=11 // pred_check
          %p165 = pneg %p61
        $region14: #{tpu_custom_call.1} parent=11 // pred_check_branch
          %167 = sbr.rel (%p165) target = $region16
        $region15: #{tpu_custom_call.1} parent=11 // pred_region
          _
        $region16: #{tpu_custom_call.1} parent=11 // pred_fallthru
          _
        // Predicated region
        $region17: #{tpu_custom_call.1} parent=11 // pred_check
          %p168 = pneg %p82
        $region18: #{tpu_custom_call.1} parent=11 // pred_check_branch
          %170 = sbr.rel (%p168) target = $region20
        $region19: #{tpu_custom_call.1} parent=11 // pred_region
          _
        $region20: #{tpu_custom_call.1} parent=11 // pred_fallthru
          _
        // Predicated region
        $region21: #{tpu_custom_call.1} parent=11 // pred_check
          %p171 = pneg %p103
        $region22: #{tpu_custom_call.1} parent=11 // pred_check_branch
          %173 = sbr.rel (%p171) target = $region24
        $region23: #{tpu_custom_call.1} parent=11 // pred_region
          _
        $region24: #{tpu_custom_call.1} parent=11 // pred_fallthru
          _
        // Predicated region
        $region25: #{tpu_custom_call.1} parent=11 // pred_check
          %p174 = pneg %p124
        $region26: #{tpu_custom_call.1} parent=11 // pred_check_branch
          %176 = sbr.rel (%p174) target = $region28
        $region27: #{tpu_custom_call.1} parent=11 // pred_region
          _
        $region28: #{tpu_custom_call.1} parent=11 // pred_fallthru
          _
      $region12: #{tpu_custom_call.1} parent=5 // pred_fallthru
        _
      %p177 = scmp.lt.s32.totalorder %s14, 2
      // Predicated region
      $region29: #{tpu_custom_call.1} parent=5 // pred_check
        %p178 = pneg %p177
      $region30: #{tpu_custom_call.1} parent=5 // pred_check_branch
        %180 = sbr.rel (%p178) target = $region32
      $region31: #{tpu_custom_call.1} parent=5 // pred_region
        // Predicated region
        $region33: #{tpu_custom_call.1} parent=31 // pred_check
          %p181 = pneg %p34
        $region34: #{tpu_custom_call.1} parent=31 // pred_check_branch
          %183 = sbr.rel (%p181) target = $region36
        $region35: #{tpu_custom_call.1} parent=31 // pred_region
          %p184 = scmp.lt.s32.totalorder %s14, 1
          %s185 = scalar_select %p184, %s14, 1
          %s186 = smul.addr %s185, 8
          %s187 = scalar_lea.vmem %s0, %s186
        $region36: #{tpu_custom_call.1} parent=31 // pred_fallthru
          _
      $region32: #{tpu_custom_call.1} parent=5 // pred_fallthru
        _
      %p188 = scmp.le.s32.totalorder 1, %s14
      %p189 = scmp.lt.s32.totalorder %s14, 3
      %p190 = pnand %p188, %p189
      %p191 = pneg %p190
      // Predicated region
      $region37: #{tpu_custom_call.1} parent=5 // pred_check
        _
      $region38: #{tpu_custom_call.1} parent=5 // pred_check_branch
        %193 = sbr.rel (%p190) target = $region40
      $region39: #{tpu_custom_call.1} parent=5 // pred_region
        %s194 = ssub.s32 %s14, 1
        %p195 = scmp.lt.s32.totalorder %s19, 1
        %s196 = scalar_select %p195, %s19, 1
        %s197 = smul.addr %s196, 8
        %s198 = scalar_lea.vmem %s0, %s197
        %p199 = pneg %p40
        %p200 = pneg %p37
        %p201 = pneg %p61
        %p202 = pneg %p58
        %p203 = pneg %p82
        %p204 = pneg %p79
        %p205 = pneg %p103
        %p206 = pneg %p100
        %p207 = pneg %p124
        %p208 = pneg %p121
        %p209 = pneg %p150
        %p210 = pneg %p147
        %s211 = sand.u32 %s137, 1
        %s212 = scalar_lea.sflag [#allocation4], %s211
        %s213 = sand.u32 %s137, 1
        %s214 = smul.addr %s213, 8
        %s215 = scalar_lea.vmem [#allocation3], %s214
        %p216 = scmp.lt.s32.totalorder %s19, 1
        %s217 = scalar_select %p216, %s19, 1
        %s218 = smul.addr %s217, 8
        %s219 = scalar_lea.vmem %s0, %s218
        %v220 = vld [vmem:[%s219] sm:$0xff]
        %v221 = vld [vmem:[%s4] sm:$0x1]
        %v223 = vlaneseq
        %v224 = vshrl.u32 %v223, 7
        %v225 = vsub.s32 0, %v224
        %v226 = vrot.slane %v221, %v225
        %vm228 = vcmask 130048
        %229 = vst.msk [vmem:[#allocation2] sm:$0xff] %vm228, %v226
        %v230 = vld [vmem:[%s1] sm:$0xff]
        %v231 = vld [vmem:[%s1 + $0x8] sm:$0xff]
        %v232 = vld [vmem:[%s1 + $0x10] sm:$0xff]
        %v233 = vld [vmem:[%s1 + $0x18] sm:$0xff]
        %v234 = vld [vmem:[%s2] sm:$0x1]
        %v236 = vlaneseq
        %v237 = vshrl.u32 %v236, 7
        %v238 = vsub.s32 0, %v237
        %v239 = vrot.slane %v234, %v238
        %vm241 = vcmask 261120
        %v243 = vsel %vm241, %v220, 0
        %245 = vmatprep.subr.mxu0 0.0
        %246 = vmatpush1.msra.mxu0 %v230
        %247 = vmatprep.subr.mxu0 0.0
        %248 = vmatpush1.msra.mxu0 %v231
        %249 = vmatprep.subr.mxu0 0.0
        %250 = vmatpush1.msra.mxu0 %v232
        %251 = vmatprep.subr.mxu0 0.0
        %252 = vmatpush1.msra.mxu0 %v233
        %253 = vmatprep.subr.mxu0 0.0
        %254 = vmatpush1.msra.mxu0 0.0
        %255 = vmatprep.subr.mxu0 0.0
        %256 = vmatpush1.msra.mxu0 0.0
        %257 = vmatprep.subr.mxu0 0.0
        %258 = vmatpush1.msra.mxu0 0.0
        %259 = vmatprep.subr.mxu0 0.0
        %260 = vmatpush1.msra.mxu0 0.0
        %261 = vmatprep.subr.mxu0 0.0
        %262 = vmatpush1.msra.mxu0 0.0
        %263 = vmatprep.subr.mxu0 0.0
        %264 = vmatpush1.msra.mxu0 0.0
        %265 = vmatprep.subr.mxu0 0.0
        %266 = vmatpush1.msra.mxu0 0.0
        %267 = vmatprep.subr.mxu0 0.0
        %268 = vmatpush1.msra.mxu0 0.0
        %269 = vmatprep.subr.mxu0 0.0
        %270 = vmatpush1.msra.mxu0 0.0
        %271 = vmatprep.subr.mxu0 0.0
        %272 = vmatpush1.msra.mxu0 0.0
        %273 = vmatprep.subr.mxu0 0.0
        %274 = vmatpush1.msra.mxu0 0.0
        %275 = vmatprep.subr.mxu0 0.0
        %276 = vmatpush1.msra.mxu0 0.0
        %277 = vmatprep.subr.mxu0 0.0
        %278 = vmatpush1.msra.mxu0 0.0
        %279 = vmatprep.subr.mxu0 0.0
        %280 = vmatpush1.msra.mxu0 0.0
        %281 = vmatprep.subr.mxu0 0.0
        %282 = vmatpush1.msra.mxu0 0.0
        %283 = vmatprep.subr.mxu0 0.0
        %284 = vmatpush1.msra.mxu0 0.0
        %285 = vmatprep.subr.mxu0 0.0
        %286 = vmatpush1.msra.mxu0 0.0
        %287 = vmatprep.subr.mxu0 0.0
        %288 = vmatpush1.msra.mxu0 0.0
        %289 = vmatprep.subr.mxu0 0.0
        %290 = vmatpush1.msra.mxu0 0.0
        %291 = vmatprep.subr.mxu0 0.0
        %292 = vmatpush1.msra.mxu0 0.0
        %293 = vmatprep.subr.mxu0 0.0
        %294 = vmatpush1.msra.mxu0 0.0
        %295 = vmatprep.subr.mxu0 0.0
        %296 = vmatpush1.msra.mxu0 0.0
        %297 = vmatprep.subr.mxu0 0.0
        %298 = vmatpush1.msra.mxu0 0.0
        %299 = vmatprep.subr.mxu0 0.0
        %300 = vmatpush1.msra.mxu0 0.0
        %301 = vmatprep.subr.mxu0 0.0
        %302 = vmatpush1.msra.mxu0 0.0
        %303 = vmatprep.subr.mxu0 0.0
        %304 = vmatpush1.msra.mxu0 0.0
        %305 = vmatprep.subr.mxu0 0.0
        %306 = vmatpush1.msra.mxu0 0.0
        %307 = vmatprep.subr.mxu0 0.0
        %308 = vmatpush1.msra.mxu0 0.0
        %309 = vmatprep.mubr.f32.mxu0 0.0
        %310 = vmatmul.mubr.f32.gmra.mrb[0].mxu0 %v243
        %v311 = vpop.f32.mrb[0].mxu0
        %v312 = vadd.f32 %v239, %v311
        %v313 = vpop.f32.mrb[0].mxu0
        %314 = vdwg.mxu0
        %v315 = vmax.f32 %v312, 0.0
        %v316 = vld [vmem:[#allocation2] sm:$0xff]
        %v317 = vld [vmem:[%s3] sm:$0xff]
        %v318 = vld [vmem:[%s3 + $0x8] sm:$0xff]
        %v319 = vld [vmem:[%s3 + $0x10] sm:$0xff]
        %v320 = vld [vmem:[%s3 + $0x18] sm:$0xff]
        %v321 = vld [vmem:[%s3 + $0x20] sm:$0xff]
        %v322 = vld [vmem:[%s3 + $0x28] sm:$0xff]
        %v323 = vld [vmem:[%s3 + $0x30] sm:$0xff]
        %v324 = vld [vmem:[%s3 + $0x38] sm:$0xff]
        %vm325 = vcmask 523264
        %v327 = vsel %vm325, %v315, 0
        %329 = vmatprep.subr.mxu0 0.0
        %330 = vmatpush1.msra.mxu0 %v317
        %331 = vmatprep.subr.mxu0 0.0
        %332 = vmatpush1.msra.mxu0 %v318
        %333 = vmatprep.subr.mxu0 0.0
        %334 = vmatpush1.msra.mxu0 %v319
        %335 = vmatprep.subr.mxu0 0.0
        %336 = vmatpush1.msra.mxu0 %v320
        %337 = vmatprep.subr.mxu0 0.0
        %338 = vmatpush1.msra.mxu0 %v321
        %339 = vmatprep.subr.mxu0 0.0
        %340 = vmatpush1.msra.mxu0 %v322
        %341 = vmatprep.subr.mxu0 0.0
        %342 = vmatpush1.msra.mxu0 %v323
        %343 = vmatprep.subr.mxu0 0.0
        %344 = vmatpush1.msra.mxu0 %v324
        %345 = vmatprep.subr.mxu0 0.0
        %346 = vmatpush1.msra.mxu0 0.0
        %347 = vmatprep.subr.mxu0 0.0
        %348 = vmatpush1.msra.mxu0 0.0
        %349 = vmatprep.subr.mxu0 0.0
        %350 = vmatpush1.msra.mxu0 0.0
        %351 = vmatprep.subr.mxu0 0.0
        %352 = vmatpush1.msra.mxu0 0.0
        %353 = vmatprep.subr.mxu0 0.0
        %354 = vmatpush1.msra.mxu0 0.0
        %355 = vmatprep.subr.mxu0 0.0
        %356 = vmatpush1.msra.mxu0 0.0
        %357 = vmatprep.subr.mxu0 0.0
        %358 = vmatpush1.msra.mxu0 0.0
        %359 = vmatprep.subr.mxu0 0.0
        %360 = vmatpush1.msra.mxu0 0.0
        %361 = vmatprep.subr.mxu0 0.0
        %362 = vmatpush1.msra.mxu0 0.0
        %363 = vmatprep.subr.mxu0 0.0
        %364 = vmatpush1.msra.mxu0 0.0
        %365 = vmatprep.subr.mxu0 0.0
        %366 = vmatpush1.msra.mxu0 0.0
        %367 = vmatprep.subr.mxu0 0.0
        %368 = vmatpush1.msra.mxu0 0.0
        %369 = vmatprep.subr.mxu0 0.0
        %370 = vmatpush1.msra.mxu0 0.0
        %371 = vmatprep.subr.mxu0 0.0
        %372 = vmatpush1.msra.mxu0 0.0
        %373 = vmatprep.subr.mxu0 0.0
        %374 = vmatpush1.msra.mxu0 0.0
        %375 = vmatprep.subr.mxu0 0.0
        %376 = vmatpush1.msra.mxu0 0.0
        %377 = vmatprep.subr.mxu0 0.0
        %378 = vmatpush1.msra.mxu0 0.0
        %379 = vmatprep.subr.mxu0 0.0
        %380 = vmatpush1.msra.mxu0 0.0
        %381 = vmatprep.subr.mxu0 0.0
        %382 = vmatpush1.msra.mxu0 0.0
        %383 = vmatprep.subr.mxu0 0.0
        %384 = vmatpush1.msra.mxu0 0.0
        %385 = vmatprep.subr.mxu0 0.0
        %386 = vmatpush1.msra.mxu0 0.0
        %387 = vmatprep.subr.mxu0 0.0
        %388 = vmatpush1.msra.mxu0 0.0
        %389 = vmatprep.subr.mxu0 0.0
        %390 = vmatpush1.msra.mxu0 0.0
        %391 = vmatprep.subr.mxu0 0.0
        %392 = vmatpush1.msra.mxu0 0.0
        %393 = vmatprep.mubr.f32.mxu0 0.0
        %394 = vmatmul.mubr.f32.gmra.mrb[0].mxu0 %v327
        %v395 = vpop.f32.mrb[0].mxu0
        %v396 = vadd.f32 0.0, %v395
        %v397 = vpop.f32.mrb[0].mxu0
        %398 = vdwg.mxu0
        %v399 = vadd.f32 %v316, %v396
        %400 = vst.msk [vmem:[#allocation2] sm:$0xff] %vm228, %v399
        %v401 = vld [vmem:[#allocation2] sm:$0xff]
        %402 = vst.msk [vmem:[%s215] sm:$0xff] %vm228, %v401
        %s403 = sand.u32 %s137, 1
        %s404 = scalar_lea.sflag [#allocation4], %s403
        %s405 = sand.u32 %s137, 1
        %s406 = smul.addr %s405, 8
        %s407 = scalar_lea.vmem [#allocation3], %s406
        // Predicated region
        $region41: #{tpu_custom_call.1} parent=39 // pred_check
          %p408 = pneg %p147
        $region42: #{tpu_custom_call.1} parent=39 // pred_check_branch
          %410 = sbr.rel (%p408) target = $region44
        $region43: #{tpu_custom_call.1} parent=39 // pred_region
          %s412 = ssub.s32 128, 128
          %413 = vsyncadd %s404, %s412
          %s414 = smul.addr %s19, 128
          %s415 = scalar_lea.hbm %s5, %s414
          %s417 = sshll.u32 %s407, 4
          %s418 = int_to_ptr.vmem [resolvable:$true] %s417
          %420 = dma.vmem_to_hbm [thread:$0]  %s418, 128, %s415, %s404
        $region44: #{tpu_custom_call.1} parent=39 // pred_fallthru
          _
      $region40: #{tpu_custom_call.1} parent=5 // pred_fallthru
        _
      %p421 = scmp.le.s32.totalorder 2, %s14
      // Predicated region
      $region45: #{tpu_custom_call.1} parent=5 // pred_check
        %p422 = pneg %p421
      $region46: #{tpu_custom_call.1} parent=5 // pred_check_branch
        %424 = sbr.rel (%p422) target = $region48
      $region47: #{tpu_custom_call.1} parent=5 // pred_region
        %s425 = ssub.s32 %s14, 2
        // Predicated region
        $region49: #{tpu_custom_call.1} parent=47 // pred_check
          %p426 = pneg %p153
        $region50: #{tpu_custom_call.1} parent=47 // pred_check_branch
          %428 = sbr.rel (%p426) target = $region52
        $region51: #{tpu_custom_call.1} parent=47 // pred_region
          %s429 = sand.u32 %s138, 1
          %s430 = scalar_lea.sflag [#allocation4], %s429
          %s431 = sand.u32 %s138, 1
          %s432 = smul.addr %s431, 8
          %s433 = scalar_lea.vmem [#allocation3], %s432
          %434 = dma.done %s430, 128
        $region52: #{tpu_custom_call.1} parent=47 // pred_fallthru
          _
      $region48: #{tpu_custom_call.1} parent=5 // pred_fallthru
        _
    $region6: #{tpu_custom_call.1} parent=1 // loop_footer
      %s18 = sadd.s32 1, %s14
    $region7: #{tpu_custom_call.1} parent=1 // loop_footer_branch
      %13 = sbr.rel target = $region3
    $region8: #{tpu_custom_call.1} parent=1 // loop_exit
      _
    %435 = vsyncpa [#allocation4], 1
    %s436 = scalar_lea.sflag [#allocation4], 1
    %437 = vsyncpa %s436, 1

</llo_original>
